<compile_context>
chip_gen: v5e
topology: v5e:2x2
jax: 0.10.0
libtpu: 0.0.40
codegen_flags: <defaults>
</compile_context>

<pallas_src>
import jax
import jax.numpy as jnp
from jax.experimental import pallas as pl
from jax.experimental.pallas import tpu as pltpu


def _make_mlp_kernel(nh, has_hidden):
    """Kernel over one batch tile, feature-major: activations are [features, B].

    refs (has_hidden=True):  x_ref [1,B] f32, small_ref [nh+2,n,1] f32,
                             wh_ref [nh-1,n,n] bf16, o_ref [1,B] f32
    small_ref layout: [0]=W0 column, [1]=b0, [2..nh]=hidden biases, [nh+1]=W_last column
    """

    def kernel(*refs):
        if has_hidden:
            x_ref, small_ref, wh_ref, o_ref = refs
        else:
            x_ref, small_ref, o_ref = refs

        x = x_ref[...]                                     # [1, B] f32
        # Layer 0: Linear(1, n) -> outer product + bias on the VPU (no MXU trip).
        h = small_ref[0] * x + small_ref[1]                # [n, B] f32

        # Hidden layers 1..nh-1: square [n, n] matmuls on the MXU, lane-dense
        # (batch on lanes).  bf16 operands, f32 accumulation; bias add in f32.
        for layer in range(1, nh):
            h = jnp.tanh(h)                                # EUP, f32
            h = jnp.dot(wh_ref[layer - 1],                 # [n, n] bf16 (static index)
                        h.astype(jnp.bfloat16),
                        preferred_element_type=jnp.float32)
            h = h + small_ref[1 + layer]                   # [n, 1] f32 bias

        # Final layer: Linear(n, 1, bias=False) -> VPU multiply + sublane reduce.
        h = jnp.tanh(h)
        out = jnp.sum(small_ref[nh + 1] * h, axis=0, keepdims=True)   # [1, B]
        o_ref[...] = out.astype(o_ref.dtype)

    return kernel


def mlp_forward(x, weights, biases, *, max_batch_tile=2048):
    """Forward pass of the NeuralNetwork module.

    x:       [batch, 1]
    weights: PyTorch-layout weights [out_i, in_i]; weights[0]=[n,1], hidden=[n,n],
             weights[-1]=[1,n]
    biases:  list of [n] (one fewer than weights; last layer has no bias)
    returns: [batch, 1] float32
    """
    batch, sizeinput = x.shape
    num_layers = len(weights)
    nh = num_layers - 1
    sizeoutput = weights[-1].shape[0]
    n = weights[0].shape[0]
    assert nh >= 1
    assert sizeinput == 1 and sizeoutput == 1, "wrapper specialized to scalar in/out"

    # ---- pack parameters into (at most) two resident blocks ----------------
    # small: [nh+2, n, 1] f32 -> W0 col, b0, hidden biases, W_last col
    cols = [weights[0].reshape(n, 1), biases[0].reshape(n, 1)]
    for li in range(1, nh):
        cols.append(biases[li].reshape(n, 1))
    cols.append(weights[-1].reshape(n, 1))
    small = jnp.stack([c.astype(jnp.float32) for c in cols], axis=0)

    has_hidden = nh >= 2
    if has_hidden:
        wh = jnp.stack([weights[li].astype(jnp.bfloat16) for li in range(1, nh)],
                       axis=0)                              # [nh-1, n, n] bf16

    # ---- batch tiling: one big lane-dense tile when possible ---------------
    padded128 = pl.cdiv(batch, 128) * 128
    batch_tile = padded128 if padded128 <= max_batch_tile else max_batch_tile
    padded = pl.cdiv(batch, batch_tile) * batch_tile
    grid = (padded // batch_tile,)

    # Feature-major input; sizeinput == 1 makes the transpose a pure reshape.
    x_fm = jnp.pad(x.astype(jnp.float32).reshape(1, batch),
                   ((0, 0), (0, padded - batch)))           # [1, padded]

    in_specs = [
        pl.BlockSpec((1, batch_tile), lambda i: (0, i)),            # x: tiled on lanes
        pl.BlockSpec(tuple(small.shape), lambda i: (0, 0, 0)),      # params: resident
    ]
    args = [x_fm, small]
    if has_hidden:
        in_specs.append(pl.BlockSpec(tuple(wh.shape), lambda i: (0, 0, 0)))
        args.append(wh)

    out_spec = pl.BlockSpec((1, batch_tile), lambda i: (0, i))

    # Only megacore-shard when every core gets a full-size tile of real work.
    semantics = ("parallel",) if grid[0] > 1 else ("arbitrary",)

    fn = pl.pallas_call(
        _make_mlp_kernel(nh, has_hidden),
        grid_spec=pltpu.PrefetchScalarGridSpec(
            num_scalar_prefetch=0,
            grid=grid,
            in_specs=in_specs,
            out_specs=out_spec,
        ),
        out_shape=jax.ShapeDtypeStruct((1, padded), jnp.float32),
        compiler_params=pltpu.CompilerParams(dimension_semantics=semantics),
    )
    out_fm = fn(*args)                                      # [1, padded], lane-dense
    # sizeoutput == 1 -> the "transpose" back is a pure reshape.
    return out_fm[:, :batch].reshape(batch, 1)


def mlp_reference(x, weights, biases, mxu_dtype=jnp.float32):
    """Pure-JAX reference in standard [batch, features] layout.

    mxu_dtype=jnp.bfloat16 reproduces the kernel's hidden-layer operand cast
    (f32 accumulation), for a tight numerical comparison.
    """
    h = x.astype(jnp.float32)
    nL = len(weights)
    for li, w in enumerate(weights):
        if li > 0:
            h = jnp.tanh(h)
        if 1 <= li < nL - 1:
            h = jnp.dot(h.astype(mxu_dtype), w.astype(mxu_dtype).T,
                        preferred_element_type=jnp.float32)
        else:
            h = h @ w.astype(jnp.float32).T
        if li < nL - 1:
            h = h + biases[li].reshape(1, -1)
    return h


def init_params(key, nh, sizeinput, sizeoutput, n):
    """Deterministic init mimicking nn.Linear: U(-1/sqrt(fan_in), 1/sqrt(fan_in)).

    Weights use the PyTorch [out_features, in_features] layout.
    """
    dims = [sizeinput] + [n] * nh + [sizeoutput]
    weights, biases = [], []
    for li in range(len(dims) - 1):
        fan_in, fan_out = dims[li], dims[li + 1]
        key, kw, kb = jax.random.split(key, 3)
        bound = 1.0 / (fan_in ** 0.5)
        w = jax.random.uniform(kw, (fan_out, fan_in), jnp.float32, -bound, bound)
        weights.append(w)
        if li < len(dims) - 2:                   # final layer: bias=False
            b = jax.random.uniform(kb, (fan_out,), jnp.float32, -bound, bound)
            biases.append(b)
    return weights, biases


if __name__ == "__main__":
    # Shapes consistent with the module: x = linspace collocation points,
    # scalar input/output, nh hidden layers of constant width n.
    nh = 3           # inp.nh
    sizeinput = 1
    sizeoutput = 1
    n = 32           # hmu(i, n, ty) -> constant hidden width
    a, b = 0.0, 5.0
    batch = int((b - a) * 50)    # num = (inp.b - inp.a) * 50 = 250 (ragged vs 128)

    key = jax.random.PRNGKey(0)
    key, kx = jax.random.split(key)
    x = jnp.linspace(a, b, batch, dtype=jnp.float32).reshape(batch, sizeinput)
    # add a touch of randomness so the test isn't purely structured
    x = x + 0.01 * jax.random.uniform(kx, x.shape, jnp.float32)

    weights, biases = init_params(key, nh, sizeinput, sizeoutput, n)

    out = mlp_forward(x, weights, biases)
    out = jax.block_until_ready(out)
    assert out.shape == (batch, sizeoutput)

    # Tight check vs a reference with matching bf16 MXU operands (f32 accum).
    ref_matched = mlp_reference(x, weights, biases, mxu_dtype=jnp.bfloat16)
    assert jnp.allclose(out, ref_matched, atol=1e-4, rtol=1e-4), \
        "mismatch vs bf16-matched reference"

    # Loose sanity check vs the pure-f32 module semantics.
    ref_f32 = mlp_reference(x, weights, biases)
    assert jnp.allclose(out, ref_f32, atol=5e-2, rtol=5e-2), \
        "mismatch vs f32 reference"

    print("KERNEL_OK")
</pallas_src>

<mosaic_0001>
module attributes {stable_mosaic.version = 11 : i64} {
  func.func @kernel(%arg0: i32, %arg1: memref<1x256xf32, #tpu.memory_space<vmem>>, %arg2: memref<5x32x1xf32, #tpu.memory_space<vmem>>, %arg3: memref<2x32x32xbf16, #tpu.memory_space<vmem>>, %arg4: memref<1x256xf32, #tpu.memory_space<vmem>>) attributes {dimension_semantics = [#tpu.dimension_semantics<arbitrary>], iteration_bounds = array<i64: 1>, scalar_prefetch = 0 : i64, scratch_operands = 0 : i64, tpu.core_type = #tpu.core_type<tc>, window_params = [{transform_indices = @transform_0, window_bounds = array<i64: 1, 256>}, {pipeline_mode = #tpu.pipeline_mode<synchronous>, transform_indices = @transform_1, window_bounds = array<i64: 5, 32, 1>}, {pipeline_mode = #tpu.pipeline_mode<synchronous>, transform_indices = @transform_2, window_bounds = array<i64: 2, 32, 32>}, {transform_indices = @transform_3, window_bounds = array<i64: 1, 256>}]} {
    %c0 = arith.constant 0 : index
    %c0_0 = arith.constant 0 : index
    %0 = vector.load %arg1[%c0, %c0_0] : memref<1x256xf32, #tpu.memory_space<vmem>>, vector<1x256xf32>
    %c0_1 = arith.constant 0 : index
    %c0_2 = arith.constant 0 : index
    %c0_3 = arith.constant 0 : index
    %1 = vector.load %arg2[%c0_1, %c0_2, %c0_3] : memref<5x32x1xf32, #tpu.memory_space<vmem>>, vector<1x32x1xf32>
    %2 = vector.shape_cast %1 : vector<1x32x1xf32> to vector<32x1xf32>
    %3 = vector.broadcast %2 : vector<32x1xf32> to vector<32x256xf32>
    %4 = vector.broadcast %0 : vector<1x256xf32> to vector<32x256xf32>
    %5 = arith.mulf %3, %4 : vector<32x256xf32>
    %c1 = arith.constant 1 : index
    %c0_4 = arith.constant 0 : index
    %c0_5 = arith.constant 0 : index
    %6 = vector.load %arg2[%c1, %c0_4, %c0_5] : memref<5x32x1xf32, #tpu.memory_space<vmem>>, vector<1x32x1xf32>
    %7 = vector.shape_cast %6 : vector<1x32x1xf32> to vector<32x1xf32>
    %8 = vector.broadcast %7 : vector<32x1xf32> to vector<32x256xf32>
    %9 = arith.addf %5, %8 : vector<32x256xf32>
    %10 = math.tanh %9 : vector<32x256xf32>
    %c0_6 = arith.constant 0 : index
    %c0_7 = arith.constant 0 : index
    %c0_8 = arith.constant 0 : index
    %11 = vector.load %arg3[%c0_6, %c0_7, %c0_8] : memref<2x32x32xbf16, #tpu.memory_space<vmem>>, vector<1x32x32xbf16>
    %12 = vector.shape_cast %11 : vector<1x32x32xbf16> to vector<32x32xbf16>
    %13 = arith.truncf %10 : vector<32x256xf32> to vector<32x256xbf16>
    %cst = arith.constant dense<0.000000e+00> : vector<32x256xf32>
    %14 = tpu.matmul %12, %13, %cst {dimension_numbers = #tpu.dot_dimension_numbers<[1], [0], [0], [1], [0, 0, 1, 1], [], []>} : vector<32x32xbf16>, vector<32x256xbf16>, vector<32x256xf32> -> vector<32x256xf32>
    %c2 = arith.constant 2 : index
    %c0_9 = arith.constant 0 : index
    %c0_10 = arith.constant 0 : index
    %15 = vector.load %arg2[%c2, %c0_9, %c0_10] : memref<5x32x1xf32, #tpu.memory_space<vmem>>, vector<1x32x1xf32>
    %16 = vector.shape_cast %15 : vector<1x32x1xf32> to vector<32x1xf32>
    %17 = vector.broadcast %16 : vector<32x1xf32> to vector<32x256xf32>
    %18 = arith.addf %14, %17 : vector<32x256xf32>
    %19 = math.tanh %18 : vector<32x256xf32>
    %c1_11 = arith.constant 1 : index
    %c0_12 = arith.constant 0 : index
    %c0_13 = arith.constant 0 : index
    %20 = vector.load %arg3[%c1_11, %c0_12, %c0_13] : memref<2x32x32xbf16, #tpu.memory_space<vmem>>, vector<1x32x32xbf16>
    %21 = vector.shape_cast %20 : vector<1x32x32xbf16> to vector<32x32xbf16>
    %22 = arith.truncf %19 : vector<32x256xf32> to vector<32x256xbf16>
    %cst_14 = arith.constant dense<0.000000e+00> : vector<32x256xf32>
    %23 = tpu.matmul %21, %22, %cst_14 {dimension_numbers = #tpu.dot_dimension_numbers<[1], [0], [0], [1], [0, 0, 1, 1], [], []>} : vector<32x32xbf16>, vector<32x256xbf16>, vector<32x256xf32> -> vector<32x256xf32>
    %c3 = arith.constant 3 : index
    %c0_15 = arith.constant 0 : index
    %c0_16 = arith.constant 0 : index
    %24 = vector.load %arg2[%c3, %c0_15, %c0_16] : memref<5x32x1xf32, #tpu.memory_space<vmem>>, vector<1x32x1xf32>
    %25 = vector.shape_cast %24 : vector<1x32x1xf32> to vector<32x1xf32>
    %26 = vector.broadcast %25 : vector<32x1xf32> to vector<32x256xf32>
    %27 = arith.addf %23, %26 : vector<32x256xf32>
    %28 = math.tanh %27 : vector<32x256xf32>
    %c4 = arith.constant 4 : index
    %c0_17 = arith.constant 0 : index
    %c0_18 = arith.constant 0 : index
    %29 = vector.load %arg2[%c4, %c0_17, %c0_18] : memref<5x32x1xf32, #tpu.memory_space<vmem>>, vector<1x32x1xf32>
    %30 = vector.shape_cast %29 : vector<1x32x1xf32> to vector<32x1xf32>
    %31 = vector.broadcast %30 : vector<32x1xf32> to vector<32x256xf32>
    %32 = arith.mulf %31, %28 : vector<32x256xf32>
    %cst_19 = arith.constant dense<0.000000e+00> : vector<256xf32>
    %33 = vector.multi_reduction <add>, %32, %cst_19 [0] : vector<32x256xf32> to vector<256xf32>
    %34 = vector.shape_cast %33 : vector<256xf32> to vector<1x256xf32>
    %c0_20 = arith.constant 0 : index
    %c0_21 = arith.constant 0 : index
    %35 = vector.load %arg4[%c0_20, %c0_21] : memref<1x256xf32, #tpu.memory_space<vmem>>, vector<1x256xf32>
    tpu.vector_store %arg4[%c0_20, %c0_21], %34 {strides = array<i32>} : memref<1x256xf32, #tpu.memory_space<vmem>>, vector<1x256xf32>,
    return
  }
  func.func @transform_0(%arg0: i32) -> (i32, i32) {
    %c0_i32 = arith.constant 0 : i32
    %c0_i32_0 = arith.constant 0 : i32
    return %c0_i32, %arg0 : i32, i32
  }
  func.func @transform_1(%arg0: i32) -> (i32, i32, i32) {
    %c0_i32 = arith.constant 0 : i32
    %c0_i32_0 = arith.constant 0 : i32
    %c0_i32_1 = arith.constant 0 : i32
    %c0_i32_2 = arith.constant 0 : i32
    return %c0_i32, %c0_i32_0, %c0_i32_1 : i32, i32, i32
  }
  func.func @transform_2(%arg0: i32) -> (i32, i32, i32) {
    %c0_i32 = arith.constant 0 : i32
    %c0_i32_0 = arith.constant 0 : i32
    %c0_i32_1 = arith.constant 0 : i32
    %c0_i32_2 = arith.constant 0 : i32
    return %c0_i32, %c0_i32_0, %c0_i32_1 : i32, i32, i32
  }
  func.func @transform_3(%arg0: i32) -> (i32, i32) {
    %c0_i32 = arith.constant 0 : i32
    %c0_i32_0 = arith.constant 0 : i32
    return %c0_i32, %arg0 : i32, i32
  }
}

</mosaic_0001>

<llo_original>
// kernel: tpu_custom_call.1
$region0: #{tpu_custom_call.1}
  #allocation0 [shape = 'u32[]', space=smem, size = 0x4, offset = 0x4, fixed_abs, tag = 'smem constant byte address 0x4 - core index']
  #allocation1 [shape = 'u32[72,128]{1,0:T(1,128)}', space=vmem, size = 0x9000, scoped, tag = 'internal scratch']
  %s0 = inlined_call_operand.vmem [shape: f32[1,256], index: 0, kind: input, shape index: {}]
  %s1 = inlined_call_operand.vmem [shape: f32[5,32,1], index: 1, kind: input, shape index: {}]
  %s2 = inlined_call_operand.vmem [shape: bf16[2,32,32], index: 2, kind: input, shape index: {}]
  %s3 = inlined_call_operand.hbm [shape: f32[1,256], index: 3, kind: output, shape index: {}]
  %s4 = sld [smem:[#allocation0]]
  $region22: #{tpu_custom_call.1} parent=0
    _
  %s6 = ssub.s32 1, %s4
  %s7 = scalar_select 0, %s6, %s4
  $region1: #{tpu_custom_call.1} parent=0
    #allocation2 [shape = 'u8[1024]{0}', space=vmem, size = 0x400, scoped, tag = 'output window, operand 0, single buffered']
    #allocation3 [shape = 's32[1]{0}', space=sflag, size = 0x4, scoped, tag = 'scoped memory for tpu_custom_call.1']
    %8 = vsyncpa [#allocation3], 0
    // Predicated region
    $region2: #{tpu_custom_call.1} parent=1 // pred_check
      _
    $region3: #{tpu_custom_call.1} parent=1 // pred_check_branch
      %10 = sbr.rel (0) target = $region5
    $region4: #{tpu_custom_call.1} parent=1 // pred_region
      _
    $region5: #{tpu_custom_call.1} parent=1 // pred_fallthru
      _
    // Predicated region
    $region6: #{tpu_custom_call.1} parent=1 // pred_check
      _
    $region7: #{tpu_custom_call.1} parent=1 // pred_check_branch
      %12 = sbr.rel (0) target = $region9
    $region8: #{tpu_custom_call.1} parent=1 // pred_region
      _
    $region9: #{tpu_custom_call.1} parent=1 // pred_fallthru
      _
    // Predicated region
    $region10: #{tpu_custom_call.1} parent=1 // pred_check
      _
    $region11: #{tpu_custom_call.1} parent=1 // pred_check_branch
      %14 = sbr.rel (0) target = $region13
    $region12: #{tpu_custom_call.1} parent=1 // pred_region
      _
    $region13: #{tpu_custom_call.1} parent=1 // pred_fallthru
      _
    %v16 = vld [vmem:[%s0] sm:$0x3]
    %v17 = vld [vmem:[%s1] sm:$0xff]
    %v18 = vld [vmem:[%s1 + $0x8] sm:$0xff]
    %v19 = vld [vmem:[%s1 + $0x10] sm:$0xff]
    %v20 = vld [vmem:[%s1 + $0x18] sm:$0xff]
    %22 = vset.pattern.permute.xlu0 0
    %23 = vperm.xlu0 %22, %v17
    %v24 = vpop.permute.xlu0 %23
    %27 = vset.pattern.permute.xlu0 0
    %28 = vperm.xlu0 %27, %v18
    %v29 = vpop.permute.xlu0 %28
    %32 = vset.pattern.permute.xlu0 0
    %33 = vperm.xlu0 %32, %v19
    %v34 = vpop.permute.xlu0 %33
    %37 = vset.pattern.permute.xlu0 0
    %38 = vperm.xlu0 %37, %v20
    %v39 = vpop.permute.xlu0 %38
    %v42 = vperm.slane %v16, 0
    %v43 = vperm.slane %v16, 1
    %v46 = vmul.f32 %v24, %v42
    %v47 = vmul.f32 %v24, %v43
    %v48 = vmul.f32 %v29, %v42
    %v49 = vmul.f32 %v29, %v43
    %v50 = vmul.f32 %v34, %v42
    %v51 = vmul.f32 %v34, %v43
    %v52 = vmul.f32 %v39, %v42
    %v53 = vmul.f32 %v39, %v43
    %s54 = scalar_lea.vmem %s1, 32
    %v55 = vld [vmem:[%s54] sm:$0xff]
    %v56 = vld [vmem:[%s54 + $0x8] sm:$0xff]
    %v57 = vld [vmem:[%s54 + $0x10] sm:$0xff]
    %v58 = vld [vmem:[%s54 + $0x18] sm:$0xff]
    %60 = vset.pattern.permute.xlu0 0
    %61 = vperm.xlu0 %60, %v55
    %v62 = vpop.permute.xlu0 %61
    %65 = vset.pattern.permute.xlu0 0
    %66 = vperm.xlu0 %65, %v56
    %v67 = vpop.permute.xlu0 %66
    %70 = vset.pattern.permute.xlu0 0
    %71 = vperm.xlu0 %70, %v57
    %v72 = vpop.permute.xlu0 %71
    %75 = vset.pattern.permute.xlu0 0
    %76 = vperm.xlu0 %75, %v58
    %v77 = vpop.permute.xlu0 %76
    %v79 = vadd.f32 %v46, %v62
    %v80 = vadd.f32 %v47, %v62
    %v81 = vadd.f32 %v48, %v67
    %v82 = vadd.f32 %v49, %v67
    %v83 = vadd.f32 %v50, %v72
    %v84 = vadd.f32 %v51, %v72
    %v85 = vadd.f32 %v52, %v77
    %v86 = vadd.f32 %v53, %v77
    %v87 = vtanh.pop %v79
    %v88 = vtanh.pop %v80
    %v89 = vtanh.pop %v81
    %v90 = vtanh.pop %v82
    %v91 = vtanh.pop %v83
    %v92 = vtanh.pop %v84
    %v93 = vtanh.pop %v85
    %v94 = vtanh.pop %v86
    %v95 = vld [vmem:[%s2] sm:$0xf]
    %v96 = vld [vmem:[%s2 + $0x4] sm:$0xf]
    %v97 = vld [vmem:[%s2 + $0x8] sm:$0xf]
    %v98 = vld [vmem:[%s2 + $0xc] sm:$0xf]
    %v99 = vpack.c.bf16 %v89, %v87
    %v100 = vpack.c.bf16 %v90, %v88
    %v101 = vpack.c.bf16 %v93, %v91
    %v102 = vpack.c.bf16 %v94, %v92
    %s103 = scalar_lea.vmem %s1, 64
    %v104 = vld [vmem:[%s103] sm:$0xff]
    %v105 = vld [vmem:[%s103 + $0x8] sm:$0xff]
    %v106 = vld [vmem:[%s103 + $0x10] sm:$0xff]
    %v107 = vld [vmem:[%s103 + $0x18] sm:$0xff]
    %109 = vset.pattern.permute.xlu0 0
    %110 = vperm.xlu0 %109, %v104
    %v111 = vpop.permute.xlu0 %110
    %114 = vset.pattern.permute.xlu0 0
    %115 = vperm.xlu0 %114, %v105
    %v116 = vpop.permute.xlu0 %115
    %119 = vset.pattern.permute.xlu0 0
    %120 = vperm.xlu0 %119, %v106
    %v121 = vpop.permute.xlu0 %120
    %124 = vset.pattern.permute.xlu0 0
    %125 = vperm.xlu0 %124, %v107
    %v126 = vpop.permute.xlu0 %125
    %v132 = vunpack.c.l.b16 %v95
    %v133 = vunpack.c.l.b16 %v96
    %v134 = vunpack.c.l.b16 %v97
    %v135 = vunpack.c.l.b16 %v98
    %v136 = vpack.c.b16 %v133, %v132
    %v137 = vpack.c.b16 %v135, %v134
    %vm138 = vcmask 261120
    %v140 = vsel %vm138, %v136, 0
    %v143 = vsel %vm138, %v137, 0
    %145 = vmatpush.bf16.msra.mxu0 0
    %146 = vmatpush.bf16.msra.mxu0 0
    %147 = vmatpush.bf16.msra.mxu0 0
    %148 = vmatpush.bf16.msra.mxu0 0
    %149 = vmatpush.bf16.msra.mxu0 0
    %150 = vmatpush.bf16.msra.mxu0 0
    %151 = vmatpush.bf16.msra.mxu0 %v101
    %152 = vmatpush.bf16.msra.mxu0 %v99
    %153 = vmatmul.bf16.gmra.mxu0 %v140
    %v154 = vpop.f32.mrf.mxu0
    %v155 = vadd.f32 %v111, %v154
    %v156 = vpop.f32.mrf.mxu0
    %v157 = vadd.f32 %v116, %v156
    %158 = vmatmul.bf16.gmra.mxu0 %v143
    %v159 = vpop.f32.mrf.mxu0
    %v160 = vadd.f32 %v121, %v159
    %v161 = vpop.f32.mrf.mxu0
    %v162 = vadd.f32 %v126, %v161
    %163 = vdwg.mxu0
    %164 = vmatpush.bf16.msra.mxu0 0
    %165 = vmatpush.bf16.msra.mxu0 0
    %166 = vmatpush.bf16.msra.mxu0 0
    %167 = vmatpush.bf16.msra.mxu0 0
    %168 = vmatpush.bf16.msra.mxu0 0
    %169 = vmatpush.bf16.msra.mxu0 0
    %170 = vmatpush.bf16.msra.mxu0 %v102
    %171 = vmatpush.bf16.msra.mxu0 %v100
    %172 = vmatmul.bf16.gmra.mxu0 %v140
    %v173 = vpop.f32.mrf.mxu0
    %v174 = vadd.f32 %v111, %v173
    %v175 = vpop.f32.mrf.mxu0
    %v176 = vadd.f32 %v116, %v175
    %177 = vmatmul.bf16.gmra.mxu0 %v143
    %v178 = vpop.f32.mrf.mxu0
    %v179 = vadd.f32 %v121, %v178
    %v180 = vpop.f32.mrf.mxu0
    %v181 = vadd.f32 %v126, %v180
    %182 = vdwg.mxu0
    %v183 = vtanh.pop %v155
    %v184 = vtanh.pop %v174
    %v185 = vtanh.pop %v157
    %v186 = vtanh.pop %v176
    %v187 = vtanh.pop %v160
    %v188 = vtanh.pop %v179
    %v189 = vtanh.pop %v162
    %v190 = vtanh.pop %v181
    %s191 = scalar_lea.vmem %s2, 16
    %v192 = vld [vmem:[%s191] sm:$0xf]
    %v193 = vld [vmem:[%s191 + $0x4] sm:$0xf]
    %v194 = vld [vmem:[%s191 + $0x8] sm:$0xf]
    %v195 = vld [vmem:[%s191 + $0xc] sm:$0xf]
    %v196 = vpack.c.bf16 %v185, %v183
    %v197 = vpack.c.bf16 %v186, %v184
    %v198 = vpack.c.bf16 %v189, %v187
    %v199 = vpack.c.bf16 %v190, %v188
    %s200 = scalar_lea.vmem %s1, 96
    %v201 = vld [vmem:[%s200] sm:$0xff]
    %v202 = vld [vmem:[%s200 + $0x8] sm:$0xff]
    %v203 = vld [vmem:[%s200 + $0x10] sm:$0xff]
    %v204 = vld [vmem:[%s200 + $0x18] sm:$0xff]
    %206 = vset.pattern.permute.xlu0 0
    %207 = vperm.xlu0 %206, %v201
    %v208 = vpop.permute.xlu0 %207
    %211 = vset.pattern.permute.xlu0 0
    %212 = vperm.xlu0 %211, %v202
    %v213 = vpop.permute.xlu0 %212
    %216 = vset.pattern.permute.xlu0 0
    %217 = vperm.xlu0 %216, %v203
    %v218 = vpop.permute.xlu0 %217
    %221 = vset.pattern.permute.xlu0 0
    %222 = vperm.xlu0 %221, %v204
    %v223 = vpop.permute.xlu0 %222
    %v229 = vunpack.c.l.b16 %v192
    %v230 = vunpack.c.l.b16 %v193
    %v231 = vunpack.c.l.b16 %v194
    %v232 = vunpack.c.l.b16 %v195
    %v233 = vpack.c.b16 %v230, %v229
    %v234 = vpack.c.b16 %v232, %v231
    %v236 = vsel %vm138, %v233, 0
    %v239 = vsel %vm138, %v234, 0
    %241 = vmatpush.bf16.msra.mxu0 0
    %242 = vmatpush.bf16.msra.mxu0 0
    %243 = vmatpush.bf16.msra.mxu0 0
    %244 = vmatpush.bf16.msra.mxu0 0
    %245 = vmatpush.bf16.msra.mxu0 0
    %246 = vmatpush.bf16.msra.mxu0 0
    %247 = vmatpush.bf16.msra.mxu0 %v198
    %248 = vmatpush.bf16.msra.mxu0 %v196
    %249 = vmatmul.bf16.gmra.mxu0 %v236
    %v250 = vpop.f32.mrf.mxu0
    %v251 = vadd.f32 %v208, %v250
    %v252 = vpop.f32.mrf.mxu0
    %v253 = vadd.f32 %v213, %v252
    %254 = vmatmul.bf16.gmra.mxu0 %v239
    %v255 = vpop.f32.mrf.mxu0
    %v256 = vadd.f32 %v218, %v255
    %v257 = vpop.f32.mrf.mxu0
    %v258 = vadd.f32 %v223, %v257
    %259 = vdwg.mxu0
    %260 = vmatpush.bf16.msra.mxu0 0
    %261 = vmatpush.bf16.msra.mxu0 0
    %262 = vmatpush.bf16.msra.mxu0 0
    %263 = vmatpush.bf16.msra.mxu0 0
    %264 = vmatpush.bf16.msra.mxu0 0
    %265 = vmatpush.bf16.msra.mxu0 0
    %266 = vmatpush.bf16.msra.mxu0 %v199
    %267 = vmatpush.bf16.msra.mxu0 %v197
    %268 = vmatmul.bf16.gmra.mxu0 %v236
    %v269 = vpop.f32.mrf.mxu0
    %v270 = vadd.f32 %v208, %v269
    %v271 = vpop.f32.mrf.mxu0
    %v272 = vadd.f32 %v213, %v271
    %273 = vmatmul.bf16.gmra.mxu0 %v239
    %v274 = vpop.f32.mrf.mxu0
    %v275 = vadd.f32 %v218, %v274
    %v276 = vpop.f32.mrf.mxu0
    %v277 = vadd.f32 %v223, %v276
    %278 = vdwg.mxu0
    %v279 = vtanh.pop %v251
    %v280 = vtanh.pop %v270
    %v281 = vtanh.pop %v253
    %v282 = vtanh.pop %v272
    %v283 = vtanh.pop %v256
    %v284 = vtanh.pop %v275
    %v285 = vtanh.pop %v258
    %v286 = vtanh.pop %v277
    %s287 = scalar_lea.vmem %s1, 128
    %v288 = vld [vmem:[%s287] sm:$0xff]
    %v289 = vld [vmem:[%s287 + $0x8] sm:$0xff]
    %v290 = vld [vmem:[%s287 + $0x10] sm:$0xff]
    %v291 = vld [vmem:[%s287 + $0x18] sm:$0xff]
    %293 = vset.pattern.permute.xlu0 0
    %294 = vperm.xlu0 %293, %v288
    %v295 = vpop.permute.xlu0 %294
    %298 = vset.pattern.permute.xlu0 0
    %299 = vperm.xlu0 %298, %v289
    %v300 = vpop.permute.xlu0 %299
    %303 = vset.pattern.permute.xlu0 0
    %304 = vperm.xlu0 %303, %v290
    %v305 = vpop.permute.xlu0 %304
    %308 = vset.pattern.permute.xlu0 0
    %309 = vperm.xlu0 %308, %v291
    %v310 = vpop.permute.xlu0 %309
    %v312 = vmul.f32 %v295, %v279
    %v313 = vmul.f32 %v295, %v280
    %v314 = vmul.f32 %v300, %v281
    %v315 = vmul.f32 %v300, %v282
    %v316 = vmul.f32 %v305, %v283
    %v317 = vmul.f32 %v305, %v284
    %v318 = vmul.f32 %v310, %v285
    %v319 = vmul.f32 %v310, %v286
    %v320 = vadd.f32 %v312, %v314
    %v321 = vadd.f32 %v320, %v316
    %v322 = vadd.f32 %v321, %v318
    %v323 = vrot.slane %v322, 4
    %v324 = vadd.f32 %v322, %v323
    %v325 = vrot.slane %v324, 2
    %v326 = vadd.f32 %v324, %v325
    %v327 = vrot.slane %v326, 1
    %v328 = vadd.f32 %v326, %v327
    %v329 = vadd.f32 %v313, %v315
    %v330 = vadd.f32 %v329, %v317
    %v331 = vadd.f32 %v330, %v319
    %v332 = vrot.slane %v331, 4
    %v333 = vadd.f32 %v331, %v332
    %v334 = vrot.slane %v333, 2
    %v335 = vadd.f32 %v333, %v334
    %v336 = vrot.slane %v335, 1
    %v337 = vadd.f32 %v335, %v336
    %v340 = vrot.slane %v337, 7
    %vm341 = vcmask 1040384
    %v342 = vsel %vm341, %v328, %v340
    %v344 = vlaneseq
    %vm345 = vcmp.ge.s32.totalorder %v344, 0
    %vm346 = vcmp.lt.s32.totalorder %v344, 256
    %vm347 = vmand %vm345, %vm346
    %348 = vst.msk [vmem:[#allocation2] sm:$0x3] %vm347, %v342
    // Predicated region
    $region14: #{tpu_custom_call.1} parent=1 // pred_check
      _
    $region15: #{tpu_custom_call.1} parent=1 // pred_check_branch
      %350 = sbr.rel (0) target = $region17
    $region16: #{tpu_custom_call.1} parent=1 // pred_region
      %352 = vsyncadd [#allocation3], 0
      %s354 = sshll.u32 [#allocation2], 4
      %s355 = int_to_ptr.vmem [resolvable:$true] %s354
      %s356 = sshll.u32 %s3, 4
      %s357 = int_to_ptr.hbm [resolvable:$true] %s356
      %359 = dma.vmem_to_hbm [thread:$0]  %s355, 32, %s357, [#allocation3]
    $region17: #{tpu_custom_call.1} parent=1 // pred_fallthru
      _
    // Predicated region
    $region18: #{tpu_custom_call.1} parent=1 // pred_check
      _
    $region19: #{tpu_custom_call.1} parent=1 // pred_check_branch
      %361 = sbr.rel (0) target = $region21
    $region20: #{tpu_custom_call.1} parent=1 // pred_region
      %363 = dma.done [#allocation3], 32
    $region21: #{tpu_custom_call.1} parent=1 // pred_fallthru
      _
    %364 = vsyncpa [#allocation3], 1

</llo_original>
